<compile_context>
chip_gen: v5e
topology: v5e:2x2
jax: 0.10.0
libtpu: 0.0.40
codegen_flags: <defaults>
</compile_context>

<pallas_src>
import functools

import jax
import jax.numpy as jnp
from jax.experimental import pallas as pl
from jax.experimental.pallas import tpu as pltpu

NEG_SLOPE = 0.01   # torch.nn.LeakyReLU default negative_slope
ROW_ALIGN = 16     # bf16 sublane packing: batch tiles in multiples of 16


def _round_up(n, m):
    return (n + m - 1) // m * m


def _cdiv(a, b):
    return (a + b - 1) // b


def _mlp_kernel(x_ref, w1_ref, b1_ref, w2_ref, b2_ref, o_ref):
    # hidden = leaky_relu(x @ W1 + b1);  out = hidden @ W2 + b2
    x = x_ref[...].astype(jnp.bfloat16)                                # (TB, K)
    h = jnp.dot(x, w1_ref[...], preferred_element_type=jnp.float32)    # MXU, f32 acc
    h = h + b1_ref[...]                                                # f32 bias
    h = jnp.where(h >= 0.0, h, NEG_SLOPE * h)                          # f32 LeakyReLU
    out = jnp.dot(h.astype(jnp.bfloat16), w2_ref[...],
                  preferred_element_type=jnp.float32)                  # MXU, f32 acc
    o_ref[...] = out + b2_ref[...]                                     # (TB, O) f32


def prepare_params(w1, b1, w2, b2):
    """One-time parameter prep (call OUTSIDE the per-step jitted path).

    Weights (stored as (in_features, out_features) so the kernel does x @ W)
    are cast to bf16 MXU inputs; biases stay f32 as (1, N) rows.
    """
    H = w1.shape[1]
    O = w2.shape[1]
    return (w1.astype(jnp.bfloat16),
            jnp.asarray(b1, jnp.float32).reshape(1, H),
            w2.astype(jnp.bfloat16),
            jnp.asarray(b2, jnp.float32).reshape(1, O))


def mlp_predictor_forward(traj_h, w1, b1, w2, b2, tb=None):
    """traj_h: (B, input_size) f32; (w1,b1,w2,b2) from prepare_params.

    Returns (B, output_size) f32.
    """
    B, K = traj_h.shape
    H = w1.shape[1]
    O = w2.shape[1]

    if tb is None:
        # Large tiles to amortize the ~0.35us per-grid-step overhead, but split
        # into >= 2 steps when B is big enough so both v7x TensorCores get work.
        tb = min(2048, _round_up(_cdiv(B, 2), 256))
    # Never exceed the (16-rounded) batch, and keep rows a multiple of 16.
    tb = max(ROW_ALIGN, _round_up(min(tb, _round_up(B, ROW_ALIGN)), ROW_ALIGN))
    grid = (_cdiv(B, tb),)

    flops = 2 * B * (K * H + H * O)
    bytes_accessed = (B * K * 4 + B * O * 4            # activations in / out
                      + K * H * 2 + H * O * 2          # bf16 weights
                      + (H + O) * 4)                   # f32 biases

    return pl.pallas_call(
        _mlp_kernel,
        out_shape=jax.ShapeDtypeStruct((B, O), jnp.float32),
        grid_spec=pltpu.PrefetchScalarGridSpec(
            num_scalar_prefetch=0,
            grid=grid,
            in_specs=[
                # activations: tiled along the batch (row) axis; last dim is the
                # full K, which is legal even when K < 128 (no padding needed).
                pl.BlockSpec((tb, K), lambda i: (i, 0)),
                # weights / biases: constant index_map -> resident in VMEM
                # across all batch tiles (DMA'd once).
                pl.BlockSpec((K, H), lambda i: (0, 0)),
                pl.BlockSpec((1, H), lambda i: (0, 0)),
                pl.BlockSpec((H, O), lambda i: (0, 0)),
                pl.BlockSpec((1, O), lambda i: (0, 0)),
            ],
            # direct (tb, O) f32 output: no padded slab, no wrapper slice.
            out_specs=pl.BlockSpec((tb, O), lambda i: (i, 0)),
        ),
        compiler_params=pltpu.CompilerParams(
            # batch tiles are independent -> megacore sharding on v7x
            dimension_semantics=("parallel",),
        ),
        cost_estimate=pl.CostEstimate(
            flops=flops, transcendentals=0, bytes_accessed=bytes_accessed),
    )(traj_h, w1, b1, w2, b2)


def init_params(key, input_size, hidden_size, output_size):
    """Deterministic init mimicking nn.Linear's uniform(-1/sqrt(fan_in), +)."""
    k1, k2, k3, k4 = jax.random.split(key, 4)
    lim1 = 1.0 / jnp.sqrt(input_size)
    lim2 = 1.0 / jnp.sqrt(hidden_size)
    # Weights stored as (in_features, out_features) so the kernel does x @ W.
    w1 = jax.random.uniform(k1, (input_size, hidden_size), jnp.float32, -lim1, lim1)
    b1 = jax.random.uniform(k2, (hidden_size,), jnp.float32, -lim1, lim1)
    w2 = jax.random.uniform(k3, (hidden_size, output_size), jnp.float32, -lim2, lim2)
    b2 = jax.random.uniform(k4, (output_size,), jnp.float32, -lim2, lim2)
    return w1, b1, w2, b2


if __name__ == "__main__":
    # Small shapes consistent with an MLP trajectory predictor ('regression').
    batch, input_size, hidden_size, output_size = 24, 32, 64, 2
    # spatial_border / pred_type only matter for .loss(); forward() ignores them.

    key = jax.random.PRNGKey(0)
    kx, kp = jax.random.split(key)
    traj_h = jax.random.normal(kx, (batch, input_size), jnp.float32)
    w1, b1, w2, b2 = init_params(kp, input_size, hidden_size, output_size)
    params = prepare_params(w1, b1, w2, b2)   # one-time cast/reshape, outside jit

    # tb=16 so the small demo exercises a multi-step grid (2 steps), including
    # a partial edge block (rows 16..23 real, 24..31 masked off).
    fwd = jax.jit(functools.partial(mlp_predictor_forward, tb=16))
    pred = jax.block_until_ready(fwd(traj_h, *params))
    assert pred.shape == (batch, output_size)

    # Reference mirrors the kernel's bf16 matmul inputs / f32 accumulation.
    xb = traj_h.astype(jnp.bfloat16).astype(jnp.float32)
    w1b = w1.astype(jnp.bfloat16).astype(jnp.float32)
    w2b = w2.astype(jnp.bfloat16).astype(jnp.float32)
    h_ref = xb @ w1b + b1.reshape(1, -1)
    h_ref = jnp.where(h_ref >= 0, h_ref, NEG_SLOPE * h_ref)
    ref = h_ref.astype(jnp.bfloat16).astype(jnp.float32) @ w2b + b2.reshape(1, -1)
    err = float(jnp.max(jnp.abs(pred - ref)))
    assert jnp.allclose(pred, ref, atol=2e-3, rtol=2e-3), err

    print("KERNEL_OK")
</pallas_src>

<mosaic_0001>
module attributes {stable_mosaic.version = 11 : i64} {
  func.func @_mlp_kernel(%arg0: i32, %arg1: memref<16x32xf32, #tpu.memory_space<vmem>>, %arg2: memref<32x64xbf16, #tpu.memory_space<vmem>>, %arg3: memref<1x64xf32, #tpu.memory_space<vmem>>, %arg4: memref<64x2xbf16, #tpu.memory_space<vmem>>, %arg5: memref<1x2xf32, #tpu.memory_space<vmem>>, %arg6: memref<16x2xf32, #tpu.memory_space<vmem>>) attributes {dimension_semantics = [#tpu.dimension_semantics<parallel>], iteration_bounds = array<i64: 2>, scalar_prefetch = 0 : i64, scratch_operands = 0 : i64, tpu.core_type = #tpu.core_type<tc>, window_params = [{transform_indices = @transform_0, window_bounds = array<i64: 16, 32>}, {pipeline_mode = #tpu.pipeline_mode<synchronous>, transform_indices = @transform_1, window_bounds = array<i64: 32, 64>}, {pipeline_mode = #tpu.pipeline_mode<synchronous>, transform_indices = @transform_2, window_bounds = array<i64: 1, 64>}, {pipeline_mode = #tpu.pipeline_mode<synchronous>, transform_indices = @transform_3, window_bounds = array<i64: 64, 2>}, {pipeline_mode = #tpu.pipeline_mode<synchronous>, transform_indices = @transform_4, window_bounds = array<i64: 1, 2>}, {transform_indices = @transform_5, window_bounds = array<i64: 16, 2>}]} {
    %c0 = arith.constant 0 : index
    %c0_0 = arith.constant 0 : index
    %0 = vector.load %arg1[%c0, %c0_0] : memref<16x32xf32, #tpu.memory_space<vmem>>, vector<16x32xf32>
    %1 = arith.truncf %0 : vector<16x32xf32> to vector<16x32xbf16>
    %c0_1 = arith.constant 0 : index
    %c0_2 = arith.constant 0 : index
    %2 = vector.load %arg2[%c0_1, %c0_2] : memref<32x64xbf16, #tpu.memory_space<vmem>>, vector<32x64xbf16>
    %cst = arith.constant dense<0.000000e+00> : vector<16x64xf32>
    %3 = tpu.matmul %1, %2, %cst {dimension_numbers = #tpu.dot_dimension_numbers<[1], [0], [0], [1], [0, 0, 1, 1], [], []>} : vector<16x32xbf16>, vector<32x64xbf16>, vector<16x64xf32> -> vector<16x64xf32>
    %c0_3 = arith.constant 0 : index
    %c0_4 = arith.constant 0 : index
    %4 = vector.load %arg3[%c0_3, %c0_4] : memref<1x64xf32, #tpu.memory_space<vmem>>, vector<1x64xf32>
    %5 = vector.broadcast %4 : vector<1x64xf32> to vector<16x64xf32>
    %6 = arith.addf %3, %5 : vector<16x64xf32>
    %cst_5 = arith.constant 0.000000e+00 : f32
    %7 = vector.broadcast %cst_5 : f32 to vector<16x64xf32>
    %8 = arith.cmpf oge, %6, %7 : vector<16x64xf32>
    %cst_6 = arith.constant 0.00999999977 : f32
    %9 = vector.broadcast %cst_6 : f32 to vector<16x64xf32>
    %10 = arith.mulf %9, %6 : vector<16x64xf32>
    %11 = arith.select %8, %6, %10 : vector<16x64xi1>, vector<16x64xf32>
    %12 = arith.truncf %11 : vector<16x64xf32> to vector<16x64xbf16>
    %c0_7 = arith.constant 0 : index
    %c0_8 = arith.constant 0 : index
    %13 = vector.load %arg4[%c0_7, %c0_8] : memref<64x2xbf16, #tpu.memory_space<vmem>>, vector<64x2xbf16>
    %cst_9 = arith.constant dense<0.000000e+00> : vector<16x2xf32>
    %14 = tpu.matmul %12, %13, %cst_9 {dimension_numbers = #tpu.dot_dimension_numbers<[1], [0], [0], [1], [0, 0, 1, 1], [], []>} : vector<16x64xbf16>, vector<64x2xbf16>, vector<16x2xf32> -> vector<16x2xf32>
    %c0_10 = arith.constant 0 : index
    %c0_11 = arith.constant 0 : index
    %15 = vector.load %arg5[%c0_10, %c0_11] : memref<1x2xf32, #tpu.memory_space<vmem>>, vector<1x2xf32>
    %16 = vector.broadcast %15 : vector<1x2xf32> to vector<16x2xf32>
    %17 = arith.addf %14, %16 : vector<16x2xf32>
    %c0_12 = arith.constant 0 : index
    %c0_13 = arith.constant 0 : index
    %18 = vector.load %arg6[%c0_12, %c0_13] : memref<16x2xf32, #tpu.memory_space<vmem>>, vector<16x2xf32>
    tpu.vector_store %arg6[%c0_12, %c0_13], %17 {strides = array<i32>} : memref<16x2xf32, #tpu.memory_space<vmem>>, vector<16x2xf32>,
    return
  }
  func.func @transform_0(%arg0: i32) -> (i32, i32) {
    %c0_i32 = arith.constant 0 : i32
    %c0_i32_0 = arith.constant 0 : i32
    return %arg0, %c0_i32 : i32, i32
  }
  func.func @transform_1(%arg0: i32) -> (i32, i32) {
    %c0_i32 = arith.constant 0 : i32
    %c0_i32_0 = arith.constant 0 : i32
    %c0_i32_1 = arith.constant 0 : i32
    return %c0_i32, %c0_i32_0 : i32, i32
  }
  func.func @transform_2(%arg0: i32) -> (i32, i32) {
    %c0_i32 = arith.constant 0 : i32
    %c0_i32_0 = arith.constant 0 : i32
    %c0_i32_1 = arith.constant 0 : i32
    return %c0_i32, %c0_i32_0 : i32, i32
  }
  func.func @transform_3(%arg0: i32) -> (i32, i32) {
    %c0_i32 = arith.constant 0 : i32
    %c0_i32_0 = arith.constant 0 : i32
    %c0_i32_1 = arith.constant 0 : i32
    return %c0_i32, %c0_i32_0 : i32, i32
  }
  func.func @transform_4(%arg0: i32) -> (i32, i32) {
    %c0_i32 = arith.constant 0 : i32
    %c0_i32_0 = arith.constant 0 : i32
    %c0_i32_1 = arith.constant 0 : i32
    return %c0_i32, %c0_i32_0 : i32, i32
  }
  func.func @transform_5(%arg0: i32) -> (i32, i32) {
    %c0_i32 = arith.constant 0 : i32
    %c0_i32_0 = arith.constant 0 : i32
    return %arg0, %c0_i32 : i32, i32
  }
}

</mosaic_0001>

<llo_original>
// kernel: mlp_predictor_forward.1
$region0: #{mlp_predictor_forward.1}
  #allocation0 [shape = 'u32[]', space=smem, size = 0x4, offset = 0x4, fixed_abs, tag = 'smem constant byte address 0x4 - core index']
  #allocation1 [shape = 'u32[72,128]{1,0:T(1,128)}', space=vmem, size = 0x9000, scoped, tag = 'internal scratch']
  %s0 = inlined_call_operand.vmem [shape: f32[24,32], index: 0, kind: input, shape index: {}]
  %s1 = inlined_call_operand.hbm [shape: bf16[32,64], index: 1, kind: input, shape index: {}]
  %s2 = inlined_call_operand.vmem [shape: f32[1,64], index: 2, kind: input, shape index: {}]
  %s3 = inlined_call_operand.vmem [shape: bf16[64,2], index: 3, kind: input, shape index: {}]
  %s4 = inlined_call_operand.vmem [shape: f32[1,2], index: 4, kind: input, shape index: {}]
  %s5 = inlined_call_operand.vmem [shape: f32[24,2], index: 5, kind: output, shape index: {}]
  %s6 = sld [smem:[#allocation0]]
  $region105: #{mlp_predictor_forward.1} parent=0
    _
  %s8 = ssub.s32 1, %s6
  %s9 = scalar_select 0, %s8, %s6
  $region1: #{mlp_predictor_forward.1} parent=0
    #allocation2 [shape = 'u8[8192]{0}', space=vmem, size = 0x2000, scoped, tag = 'input window, operand 1, single buffered']
    #allocation3 [shape = 's32[2]{0}', space=sflag, size = 0x8, scoped, tag = 'scoped memory for mlp_predictor_forward.1']
    #allocation4 [shape = 'u8[16384]{0}', space=vmem, size = 0x4000, scoped, tag = 'output window, operand 0']
    %10 = vsyncpa [#allocation3], 0
    loop: start=0, step=1, limit=4
    $region2: #{mlp_predictor_forward.1} parent=1 // loop_pre_header
      _
    $region3: #{mlp_predictor_forward.1} parent=1 // loop_header
      %s12 = sphi 0, %s16
      %p13 = scmp.ge.s32.totalorder %s12, 4
      %s22 = sphi 0, %s24
      %s25 = sphi 0, %s22
      %s26 = sphi 0, %s25
      %s42 = sphi 0, %s26
      %s46 = sphi 0, %s46
      %s48 = sphi 0, %s46
      %s49 = sphi 0, %s48
      %s63 = sphi 0, %s49
      %s67 = sphi 0, %s67
      %s69 = sphi 0, %s67
      %s70 = sphi 0, %s69
      %s84 = sphi 0, %s70
      %s88 = sphi 0, %s88
      %s90 = sphi 0, %s88
      %s91 = sphi 0, %s90
      %s105 = sphi 0, %s91
      %s109 = sphi 0, %s109
      %s111 = sphi 0, %s109
      %s112 = sphi 0, %s111
      %s126 = sphi 0, %s112
      %s132 = sphi 0, %s134
      %s135 = sphi 0, %s132
      %s136 = sphi 0, %s135
      %s152 = sphi 0, %s136
    $region4: #{mlp_predictor_forward.1} parent=1 // loop_header_branch
      %15 = sbr.rel (%p13) target = $region8
    $region5: #{mlp_predictor_forward.1} parent=1 // loop_body
      %s17 = ssub.s32 %s12, 1
      %s18 = ssub.s32 %s12, 2
      %s19 = sadd.s32 %s12, 1
      %s20 = ssub.s32 %s12, %s19
      %p21 = scmp.eq.s32.totalorder %s20, 0
      %s23 = sadd.s32 %s22, 1
      %s24 = scalar_select %p21, %s22, %s23
      %p27 = pneg %p21
      %p28 = scmp.eq.s32.totalorder %s12, 1
      %p29 = por %p27, %p28
      %p30 = scmp.ne.s32.totalorder %s22, %s25
      %p31 = scmp.eq.s32.totalorder %s12, 0
      %p32 = por %p30, %p31
      %p33 = scmp.ne.s32.totalorder %s22, %s25
      %p34 = scmp.eq.s32.totalorder %s17, 1
      %p35 = por %p33, %p34
      %p36 = scmp.ne.s32.totalorder %s25, %s26
      %p37 = scmp.eq.s32.totalorder %s17, 0
      %p38 = por %p36, %p37
      %p39 = scmp.ne.s32.totalorder %s25, %s26
      %p40 = scmp.eq.s32.totalorder %s18, 1
      %p41 = por %p39, %p40
      %p43 = scmp.ne.s32.totalorder %s26, %s42
      %p44 = scmp.eq.s32.totalorder %s18, 0
      %p45 = por %p43, %p44
      %s47 = sadd.s32 %s46, 1
      %p50 = scmp.eq.s32.totalorder %s12, 1
      %p51 = scmp.ne.s32.totalorder %s46, %s48
      %p52 = scmp.eq.s32.totalorder %s12, 0
      %p53 = por %p51, %p52
      %p54 = scmp.ne.s32.totalorder %s46, %s48
      %p55 = scmp.eq.s32.totalorder %s17, 1
      %p56 = por %p54, %p55
      %p57 = scmp.ne.s32.totalorder %s48, %s49
      %p58 = scmp.eq.s32.totalorder %s17, 0
      %p59 = por %p57, %p58
      %p60 = scmp.ne.s32.totalorder %s48, %s49
      %p61 = scmp.eq.s32.totalorder %s18, 1
      %p62 = por %p60, %p61
      %p64 = scmp.ne.s32.totalorder %s49, %s63
      %p65 = scmp.eq.s32.totalorder %s18, 0
      %p66 = por %p64, %p65
      %s68 = sadd.s32 %s67, 1
      %p71 = scmp.eq.s32.totalorder %s12, 1
      %p72 = scmp.ne.s32.totalorder %s67, %s69
      %p73 = scmp.eq.s32.totalorder %s12, 0
      %p74 = por %p72, %p73
      %p75 = scmp.ne.s32.totalorder %s67, %s69
      %p76 = scmp.eq.s32.totalorder %s17, 1
      %p77 = por %p75, %p76
      %p78 = scmp.ne.s32.totalorder %s69, %s70
      %p79 = scmp.eq.s32.totalorder %s17, 0
      %p80 = por %p78, %p79
      %p81 = scmp.ne.s32.totalorder %s69, %s70
      %p82 = scmp.eq.s32.totalorder %s18, 1
      %p83 = por %p81, %p82
      %p85 = scmp.ne.s32.totalorder %s70, %s84
      %p86 = scmp.eq.s32.totalorder %s18, 0
      %p87 = por %p85, %p86
      %s89 = sadd.s32 %s88, 1
      %p92 = scmp.eq.s32.totalorder %s12, 1
      %p93 = scmp.ne.s32.totalorder %s88, %s90
      %p94 = scmp.eq.s32.totalorder %s12, 0
      %p95 = por %p93, %p94
      %p96 = scmp.ne.s32.totalorder %s88, %s90
      %p97 = scmp.eq.s32.totalorder %s17, 1
      %p98 = por %p96, %p97
      %p99 = scmp.ne.s32.totalorder %s90, %s91
      %p100 = scmp.eq.s32.totalorder %s17, 0
      %p101 = por %p99, %p100
      %p102 = scmp.ne.s32.totalorder %s90, %s91
      %p103 = scmp.eq.s32.totalorder %s18, 1
      %p104 = por %p102, %p103
      %p106 = scmp.ne.s32.totalorder %s91, %s105
      %p107 = scmp.eq.s32.totalorder %s18, 0
      %p108 = por %p106, %p107
      %s110 = sadd.s32 %s109, 1
      %p113 = scmp.eq.s32.totalorder %s12, 1
      %p114 = scmp.ne.s32.totalorder %s109, %s111
      %p115 = scmp.eq.s32.totalorder %s12, 0
      %p116 = por %p114, %p115
      %p117 = scmp.ne.s32.totalorder %s109, %s111
      %p118 = scmp.eq.s32.totalorder %s17, 1
      %p119 = por %p117, %p118
      %p120 = scmp.ne.s32.totalorder %s111, %s112
      %p121 = scmp.eq.s32.totalorder %s17, 0
      %p122 = por %p120, %p121
      %p123 = scmp.ne.s32.totalorder %s111, %s112
      %p124 = scmp.eq.s32.totalorder %s18, 1
      %p125 = por %p123, %p124
      %p127 = scmp.ne.s32.totalorder %s112, %s126
      %p128 = scmp.eq.s32.totalorder %s18, 0
      %p129 = por %p127, %p128
      %s130 = ssub.s32 %s12, %s19
      %p131 = scmp.eq.s32.totalorder %s130, 0
      %s133 = sadd.s32 %s132, 1
      %s134 = scalar_select %p131, %s132, %s133
      %p137 = pneg %p131
      %p138 = scmp.eq.s32.totalorder %s12, 1
      %p139 = por %p137, %p138
      %p140 = scmp.ne.s32.totalorder %s132, %s135
      %p141 = scmp.eq.s32.totalorder %s12, 0
      %p142 = por %p140, %p141
      %p143 = scmp.ne.s32.totalorder %s132, %s135
      %p144 = scmp.eq.s32.totalorder %s17, 1
      %p145 = por %p143, %p144
      %p146 = scmp.ne.s32.totalorder %s135, %s136
      %p147 = scmp.eq.s32.totalorder %s17, 0
      %p148 = por %p146, %p147
      %p149 = scmp.ne.s32.totalorder %s135, %s136
      %p150 = scmp.eq.s32.totalorder %s18, 1
      %p151 = por %p149, %p150
      %p153 = scmp.ne.s32.totalorder %s136, %s152
      %p154 = scmp.eq.s32.totalorder %s18, 0
      %p155 = por %p153, %p154
      %p156 = scmp.le.s32.totalorder 1, %s12
      %p157 = scmp.lt.s32.totalorder %s12, 3
      %p158 = pnand %p156, %p157
      %p159 = pneg %p158
      // Predicated region
      $region9: #{mlp_predictor_forward.1} parent=5 // pred_check
        _
      $region10: #{mlp_predictor_forward.1} parent=5 // pred_check_branch
        %161 = sbr.rel (%p158) target = $region12
      $region11: #{mlp_predictor_forward.1} parent=5 // pred_region
        %s162 = ssub.s32 %s12, 1
        // Predicated region
        $region13: #{mlp_predictor_forward.1} parent=11 // pred_check
          %p163 = pneg %p59
        $region14: #{mlp_predictor_forward.1} parent=11 // pred_check_branch
          %165 = sbr.rel (%p163) target = $region16
        $region15: #{mlp_predictor_forward.1} parent=11 // pred_region
          %167 = vsyncadd [#allocation3], 0
          %s168 = sshll.u32 %s1, 4
          %s169 = int_to_ptr.hbm [resolvable:$true] %s168
          %s170 = sshll.u32 [#allocation2], 4
          %s171 = int_to_ptr.vmem [resolvable:$true] %s170
          %176 = dma.hbm_to_vmem [thread:$0]  %s169, 256, %s171, [#allocation3], 64, 64, 4
        $region16: #{mlp_predictor_forward.1} parent=11 // pred_fallthru
          _
        // Predicated region
        $region17: #{mlp_predictor_forward.1} parent=11 // pred_check
          %p177 = pneg %p80
        $region18: #{mlp_predictor_forward.1} parent=11 // pred_check_branch
          %179 = sbr.rel (%p177) target = $region20
        $region19: #{mlp_predictor_forward.1} parent=11 // pred_region
          _
        $region20: #{mlp_predictor_forward.1} parent=11 // pred_fallthru
          _
        // Predicated region
        $region21: #{mlp_predictor_forward.1} parent=11 // pred_check
          %p180 = pneg %p101
        $region22: #{mlp_predictor_forward.1} parent=11 // pred_check_branch
          %182 = sbr.rel (%p180) target = $region24
        $region23: #{mlp_predictor_forward.1} parent=11 // pred_region
          _
        $region24: #{mlp_predictor_forward.1} parent=11 // pred_fallthru
          _
        // Predicated region
        $region25: #{mlp_predictor_forward.1} parent=11 // pred_check
          %p183 = pneg %p122
        $region26: #{mlp_predictor_forward.1} parent=11 // pred_check_branch
          %185 = sbr.rel (%p183) target = $region28
        $region27: #{mlp_predictor_forward.1} parent=11 // pred_region
          _
        $region28: #{mlp_predictor_forward.1} parent=11 // pred_fallthru
          _
      $region12: #{mlp_predictor_forward.1} parent=5 // pred_fallthru
        _
      %p186 = scmp.lt.s32.totalorder %s12, 2
      // Predicated region
      $region29: #{mlp_predictor_forward.1} parent=5 // pred_check
        %p187 = pneg %p186
      $region30: #{mlp_predictor_forward.1} parent=5 // pred_check_branch
        %189 = sbr.rel (%p187) target = $region32
      $region31: #{mlp_predictor_forward.1} parent=5 // pred_region
        // Predicated region
        $region33: #{mlp_predictor_forward.1} parent=31 // pred_check
          %p190 = pneg %p32
        $region34: #{mlp_predictor_forward.1} parent=31 // pred_check_branch
          %192 = sbr.rel (%p190) target = $region36
        $region35: #{mlp_predictor_forward.1} parent=31 // pred_region
          %s193 = smul.u32 2, %s12
          %s194 = ssub.s32 3, %s193
          %p195 = scmp.lt.s32.totalorder %s194, 2
          %s196 = scalar_select %p195, %s194, 2
          %s197 = smul.u32 8, %s196
          %p198 = scmp.lt.s32.totalorder %s193, 2
          %s199 = scalar_select %p198, %s193, 2
          %s200 = smul.addr %s199, 8
          %s201 = scalar_lea.vmem %s0, %s200
          %s202 = smul.u32 2, %s12
          %s203 = ssub.s32 3, %s202
          %p204 = scmp.lt.s32.totalorder %s203, 2
          %s205 = scalar_select %p204, %s203, 2
          %s206 = smul.u32 8, %s205
        $region36: #{mlp_predictor_forward.1} parent=31 // pred_fallthru
          _
      $region32: #{mlp_predictor_forward.1} parent=5 // pred_fallthru
        _
      %p207 = scmp.le.s32.totalorder 1, %s12
      %p208 = scmp.lt.s32.totalorder %s12, 3
      %p209 = pnand %p207, %p208
      %p210 = pneg %p209
      // Predicated region
      $region37: #{mlp_predictor_forward.1} parent=5 // pred_check
        _
      $region38: #{mlp_predictor_forward.1} parent=5 // pred_check_branch
        %212 = sbr.rel (%p209) target = $region40
      $region39: #{mlp_predictor_forward.1} parent=5 // pred_region
        %s213 = ssub.s32 %s12, 1
        // Predicated region
        $region41: #{mlp_predictor_forward.1} parent=39 // pred_check
          %p214 = pneg %p59
        $region42: #{mlp_predictor_forward.1} parent=39 // pred_check_branch
          %216 = sbr.rel (%p214) target = $region44
        $region43: #{mlp_predictor_forward.1} parent=39 // pred_region
          %218 = dma.done [#allocation3], 256
        $region44: #{mlp_predictor_forward.1} parent=39 // pred_fallthru
          _
        %s219 = smul.u32 2, %s17
        %s220 = ssub.s32 3, %s219
        %p221 = scmp.lt.s32.totalorder %s220, 2
        %s222 = scalar_select %p221, %s220, 2
        %s223 = smul.u32 8, %s222
        %p224 = scmp.lt.s32.totalorder %s219, 2
        %s225 = scalar_select %p224, %s219, 2
        %s226 = smul.addr %s225, 8
        %s227 = scalar_lea.vmem %s0, %s226
        %p228 = pneg %p38
        %p229 = pneg %p35
        %p230 = pneg %p59
        %p231 = pneg %p56
        %p232 = pneg %p80
        %p233 = pneg %p77
        %p234 = pneg %p101
        %p235 = pneg %p98
        %p236 = pneg %p122
        %p237 = pneg %p119
        %p238 = pneg %p148
        %p239 = pneg %p145
        %s240 = sand.u32 %s135, 1
        %s241 = sand.u32 %s135, 1
        %s242 = smul.addr %s241, 16
        %s243 = scalar_lea.vmem [#allocation4], %s242
        %s244 = smul.u32 2, %s17
        %s245 = ssub.s32 3, %s244
        %p246 = scmp.lt.s32.totalorder %s245, 2
        %s247 = scalar_select %p246, %s245, 2
        %s248 = smul.u32 8, %s247
        %p249 = scmp.lt.s32.totalorder %s244, 2
        %s250 = scalar_select %p249, %s244, 2
        %s251 = smul.addr %s250, 8
        %s252 = scalar_lea.vmem %s0, %s251
        %s253 = smul.u32 2, %s17
        %s254 = ssub.s32 3, %s253
        %p255 = scmp.lt.s32.totalorder %s254, 2
        %s256 = scalar_select %p255, %s254, 2
        %s257 = smul.u32 8, %s256
        %s258 = smul.u32 2, %s17
        %s259 = ssub.s32 3, %s258
        %p260 = scmp.lt.s32.totalorder %s259, 2
        %s261 = scalar_select %p260, %s259, 2
        %s262 = smul.u32 8, %s261
        %v264 = vld [vmem:[%s252] sm:$0xff]
        %v265 = vld [vmem:[%s252 + $0x8] sm:$0xff]
        %v266 = vpack.c.bf16 %v265, %v264
        %v267 = vld [vmem:[#allocation2] sm:$0xf]
        %v268 = vld [vmem:[#allocation2 + $0x4] sm:$0xf]
        %v269 = vld [vmem:[#allocation2 + $0x8] sm:$0xf]
        %v270 = vld [vmem:[#allocation2 + $0xc] sm:$0xf]
        %v271 = vld [vmem:[%s2] sm:$0x1]
        %v273 = vperm.slane %v271, 0
        %v279 = vunpack.c.l.b16 %v267
        %v280 = vunpack.c.l.b16 %v268
        %v281 = vunpack.c.l.b16 %v269
        %v282 = vunpack.c.l.b16 %v270
        %v283 = vpack.c.b16 %v280, %v279
        %v284 = vpack.c.b16 %v282, %v281
        %vm287 = vcmask 261120
        %v289 = vsel %vm287, %v266, 0
        %291 = vmatpush.bf16.msra.mxu0 0
        %292 = vmatpush.bf16.msra.mxu0 0
        %293 = vmatpush.bf16.msra.mxu0 0
        %294 = vmatpush.bf16.msra.mxu0 0
        %295 = vmatpush.bf16.msra.mxu0 0
        %296 = vmatpush.bf16.msra.mxu0 0
        %297 = vmatpush.bf16.msra.mxu0 %v284
        %298 = vmatpush.bf16.msra.mxu0 %v283
        %299 = vmatmul.bf16.gmra.mxu0 %v289
        %v300 = vpop.f32.mrf.mxu0
        %v301 = vadd.f32 %v273, %v300
        %v302 = vpop.f32.mrf.mxu0
        %v303 = vadd.f32 %v273, %v302
        %304 = vdwg.mxu0
        %vm305 = vcmp.ge.f32.partialorder %v301, 0.0
        %vm306 = vcmp.ge.f32.partialorder %v303, 0.0
        %v307 = vmul.f32 %v301, 0.01
        %v308 = vmul.f32 %v303, 0.01
        %v309 = vsel %vm305, %v301, %v307
        %v310 = vsel %vm306, %v303, %v308
        %v311 = vpack.c.bf16 %v310, %v309
        %v312 = vld [vmem:[%s3] sm:$0xf]
        %v313 = vld [vmem:[%s3 + $0x4] sm:$0xf]
        %v314 = vld [vmem:[%s3 + $0x8] sm:$0xf]
        %v315 = vld [vmem:[%s3 + $0xc] sm:$0xf]
        %v316 = vld [vmem:[%s3 + $0x10] sm:$0xf]
        %v317 = vld [vmem:[%s3 + $0x14] sm:$0xf]
        %v318 = vld [vmem:[%s3 + $0x18] sm:$0xf]
        %v319 = vld [vmem:[%s3 + $0x1c] sm:$0xf]
        %v320 = vld [vmem:[%s4] sm:$0x1]
        %v322 = vperm.slane %v320, 0
        %v332 = vunpack.c.l.b16 %v312
        %v333 = vunpack.c.l.b16 %v313
        %v334 = vunpack.c.l.b16 %v314
        %v335 = vunpack.c.l.b16 %v315
        %v336 = vunpack.c.l.b16 %v316
        %v337 = vunpack.c.l.b16 %v317
        %v338 = vunpack.c.l.b16 %v318
        %v339 = vunpack.c.l.b16 %v319
        %v340 = vpack.c.b16 %v333, %v332
        %v341 = vpack.c.b16 %v335, %v334
        %v342 = vpack.c.b16 %v337, %v336
        %v343 = vpack.c.b16 %v339, %v338
        %vm348 = vcmask 523264
        %v350 = vsel %vm348, %v311, 0
        %352 = vmatpush.bf16.msra.mxu0 0
        %353 = vmatpush.bf16.msra.mxu0 0
        %354 = vmatpush.bf16.msra.mxu0 0
        %355 = vmatpush.bf16.msra.mxu0 0
        %356 = vmatpush.bf16.msra.mxu0 %v343
        %357 = vmatpush.bf16.msra.mxu0 %v342
        %358 = vmatpush.bf16.msra.mxu0 %v341
        %359 = vmatpush.bf16.msra.mxu0 %v340
        %360 = vmatmul.bf16.gmra.mxu0 %v350
        %v361 = vpop.f32.mrf.mxu0
        %v362 = vadd.f32 %v322, %v361
        %v363 = vpop.f32.mrf.mxu0
        %v364 = vadd.f32 %v322, %v363
        %365 = vdwg.mxu0
        %vm366 = vcmask 15360
        %367 = vst.msk [vmem:[%s243] sm:$0xff] %vm366, %v362
        %368 = vst.msk [vmem:[%s243 + $0x8] sm:$0xff] %vm366, %v364
        %s369 = sand.u32 %s135, 1
        %s370 = sand.u32 %s135, 1
        %s371 = smul.addr %s370, 16
        %s372 = scalar_lea.vmem [#allocation4], %s371
        // Predicated region
        $region45: #{mlp_predictor_forward.1} parent=39 // pred_check
          %p373 = pneg %p145
        $region46: #{mlp_predictor_forward.1} parent=39 // pred_check_branch
          %375 = sbr.rel (%p373) target = $region48
        $region47: #{mlp_predictor_forward.1} parent=39 // pred_region
          %s376 = smul.u32 2, %s17
          %s377 = ssub.s32 3, %s376
          %p378 = scmp.lt.s32.totalorder %s377, 2
          %s379 = scalar_select %p378, %s377, 2
          %s380 = smul.u32 8, %s379
          %p381 = scmp.ne.s32.totalorder 0, %s380
          %s382 = smul.addr %s376, 8
          %s383 = scalar_lea.vmem %s5, %s382
          // Predicated region
          $region49: #{mlp_predictor_forward.1} parent=47 // pred_check
            %p384 = pneg %p381
          $region50: #{mlp_predictor_forward.1} parent=47 // pred_check_branch
            %386 = sbr.rel (%p384) target = $region52
          $region51: #{mlp_predictor_forward.1} parent=47 // pred_region
            // Predicated region
            $region53: #{mlp_predictor_forward.1} parent=51 // pred_check
              _
            $region54: #{mlp_predictor_forward.1} parent=51 // pred_check_branch
              %388 = sbr.rel (0) target = $region56
            $region55: #{mlp_predictor_forward.1} parent=51 // pred_region
              // Predicated region
              $region75: #{mlp_predictor_forward.1} parent=55 // pred_check
                _
              $region76: #{mlp_predictor_forward.1} parent=55 // pred_check_branch
                %440 = sbr.rel (0) target = $region78
              $region77: #{mlp_predictor_forward.1} parent=55 // pred_region
                %s441 = sshrl.u32 %s379, 1
                // While loop
                $region79: #{mlp_predictor_forward.1} parent=77 // loop_pre_header
                  _
                $region80: #{mlp_predictor_forward.1} parent=77 // loop_header
                  %s443 = sphi 0, %s445
                  %p444 = scmp.ge.s32.totalorder %s443, %s441
                  %s448 = sphi 0, %s457
                  %s449 = sphi %s372, %s460
                  %s450 = sphi %s383, %s461
                $region81: #{mlp_predictor_forward.1} parent=77 // loop_header_branch
                  %447 = sbr.rel (%p444) target = $region85
                $region82: #{mlp_predictor_forward.1} parent=77 // loop_body
                  %v451 = vld [vmem:[%s449] sm:$0xff]
                  %452 = vst [vmem:[%s450] sm:$0xff] %v451
                  %v453 = vld [vmem:[%s449 + $0x8] sm:$0xff]
                  %454 = vst [vmem:[%s450 + $0x8] sm:$0xff] %v453
                  %s455 = sadd.s32 1, %s448
                  %p456 = scmp.ge.s32.totalorder %s455, %s441
                  %s457 = scalar_select %p456, 0, %s455
                  %s458 = smul.u32 %s457, 16
                  %s459 = smul.u32 %s457, 16
                  %s460 = scalar_lea.vmem %s372, %s458 [#allocation4]
                  %s461 = scalar_lea.vmem %s383, %s459
                $region83: #{mlp_predictor_forward.1} parent=77 // loop_footer
                  %s445 = sadd.s32 %s443, 1
                $region84: #{mlp_predictor_forward.1} parent=77 // loop_footer_branch
                  %442 = sbr.rel target = $region80
                $region85: #{mlp_predictor_forward.1} parent=77 // loop_exit
                  _
                %s462 = sshrl.u32 %s379, 1
                %s463 = sand.u32 %s379, 1
                %s464 = smul.u32 %s462, 2
                %s465 = smul.u32 8, %s464
                %s466 = scalar_lea.vmem %s372, %s465 [#allocation4]
                %s467 = smul.u32 8, %s464
                %s468 = scalar_lea.vmem %s383, %s467
                // While loop
                $region86: #{mlp_predictor_forward.1} parent=77 // loop_pre_header
                  _
                $region87: #{mlp_predictor_forward.1} parent=77 // loop_header
                  %s470 = sphi 0, %s472
                  %p471 = scmp.ge.s32.totalorder %s470, %s463
                  %s475 = sphi 0, %s482
                  %s476 = sphi %s466, %s485
                  %s477 = sphi %s468, %s486
                $region88: #{mlp_predictor_forward.1} parent=77 // loop_header_branch
                  %474 = sbr.rel (%p471) target = $region92
                $region89: #{mlp_predictor_forward.1} parent=77 // loop_body
                  %v478 = vld [vmem:[%s476] sm:$0xff]
                  %479 = vst [vmem:[%s477] sm:$0xff] %v478
                  %s480 = sadd.s32 1, %s475
                  %p481 = scmp.ge.s32.totalorder %s480, %s463
                  %s482 = scalar_select %p481, 0, %s480
                  %s483 = smul.u32 %s482, 8
                  %s484 = smul.u32 %s482, 8
                  %s485 = scalar_lea.vmem %s466, %s483 [#allocation4]
                  %s486 = scalar_lea.vmem %s468, %s484
                $region90: #{mlp_predictor_forward.1} parent=77 // loop_footer
                  %s472 = sadd.s32 %s470, 1
                $region91: #{mlp_predictor_forward.1} parent=77 // loop_footer_branch
                  %469 = sbr.rel target = $region87
                $region92: #{mlp_predictor_forward.1} parent=77 // loop_exit
                  _
              $region78: #{mlp_predictor_forward.1} parent=55 // pred_fallthru
                _
              // Predicated region
              $region93: #{mlp_predictor_forward.1} parent=55 // pred_check
                _
              $region94: #{mlp_predictor_forward.1} parent=55 // pred_check_branch
                %488 = sbr.rel target = $region96
              $region95: #{mlp_predictor_forward.1} parent=55 // pred_region
                _
              $region96: #{mlp_predictor_forward.1} parent=55 // pred_fallthru
                _
            $region56: #{mlp_predictor_forward.1} parent=51 // pred_fallthru
              _
            // Predicated region
            $region57: #{mlp_predictor_forward.1} parent=51 // pred_check
              _
            $region58: #{mlp_predictor_forward.1} parent=51 // pred_check_branch
              %390 = sbr.rel target = $region60
            $region59: #{mlp_predictor_forward.1} parent=51 // pred_region
              %s392 = ssub.s32 256, 1
              %s393 = sshrl.u32 %s379, 1
              // While loop
              $region61: #{mlp_predictor_forward.1} parent=59 // loop_pre_header
                _
              $region62: #{mlp_predictor_forward.1} parent=59 // loop_header
                %s395 = sphi 0, %s397
                %p396 = scmp.ge.s32.totalorder %s395, %s393
                %s400 = sphi 0, %s409
                %s401 = sphi %s372, %s412
                %s402 = sphi %s383, %s413
              $region63: #{mlp_predictor_forward.1} parent=59 // loop_header_branch
                %399 = sbr.rel (%p396) target = $region67
              $region64: #{mlp_predictor_forward.1} parent=59 // loop_body
                %v403 = vld [vmem:[%s401] sm:%s392]
                %404 = vst [vmem:[%s402] sm:%s392] %v403
                %v405 = vld [vmem:[%s401 + $0x8] sm:%s392]
                %406 = vst [vmem:[%s402 + $0x8] sm:%s392] %v405
                %s407 = sadd.s32 1, %s400
                %p408 = scmp.ge.s32.totalorder %s407, %s393
                %s409 = scalar_select %p408, 0, %s407
                %s410 = smul.u32 %s409, 16
                %s411 = smul.u32 %s409, 16
                %s412 = scalar_lea.vmem %s372, %s410 [#allocation4]
                %s413 = scalar_lea.vmem %s383, %s411
              $region65: #{mlp_predictor_forward.1} parent=59 // loop_footer
                %s397 = sadd.s32 %s395, 1
              $region66: #{mlp_predictor_forward.1} parent=59 // loop_footer_branch
                %394 = sbr.rel target = $region62
              $region67: #{mlp_predictor_forward.1} parent=59 // loop_exit
                _
              %s414 = sshrl.u32 %s379, 1
              %s415 = sand.u32 %s379, 1
              %s416 = smul.u32 %s414, 2
              %s417 = smul.u32 8, %s416
              %s418 = scalar_lea.vmem %s372, %s417 [#allocation4]
              %s419 = smul.u32 8, %s416
              %s420 = scalar_lea.vmem %s383, %s419
              // While loop
              $region68: #{mlp_predictor_forward.1} parent=59 // loop_pre_header
                _
              $region69: #{mlp_predictor_forward.1} parent=59 // loop_header
                %s422 = sphi 0, %s424
                %p423 = scmp.ge.s32.totalorder %s422, %s415
                %s427 = sphi 0, %s434
                %s428 = sphi %s418, %s437
                %s429 = sphi %s420, %s438
              $region70: #{mlp_predictor_forward.1} parent=59 // loop_header_branch
                %426 = sbr.rel (%p423) target = $region74
              $region71: #{mlp_predictor_forward.1} parent=59 // loop_body
                %v430 = vld [vmem:[%s428] sm:%s392]
                %431 = vst [vmem:[%s429] sm:%s392] %v430
                %s432 = sadd.s32 1, %s427
                %p433 = scmp.ge.s32.totalorder %s432, %s415
                %s434 = scalar_select %p433, 0, %s432
                %s435 = smul.u32 %s434, 8
                %s436 = smul.u32 %s434, 8
                %s437 = scalar_lea.vmem %s418, %s435 [#allocation4]
                %s438 = scalar_lea.vmem %s420, %s436
              $region72: #{mlp_predictor_forward.1} parent=59 // loop_footer
                %s424 = sadd.s32 %s422, 1
              $region73: #{mlp_predictor_forward.1} parent=59 // loop_footer_branch
                %421 = sbr.rel target = $region69
              $region74: #{mlp_predictor_forward.1} parent=59 // loop_exit
                _
            $region60: #{mlp_predictor_forward.1} parent=51 // pred_fallthru
              _
          $region52: #{mlp_predictor_forward.1} parent=47 // pred_fallthru
            _
          %489 = vnop
        $region48: #{mlp_predictor_forward.1} parent=39 // pred_fallthru
          _
      $region40: #{mlp_predictor_forward.1} parent=5 // pred_fallthru
        _
      %p490 = scmp.le.s32.totalorder 2, %s12
      // Predicated region
      $region97: #{mlp_predictor_forward.1} parent=5 // pred_check
        %p491 = pneg %p490
      $region98: #{mlp_predictor_forward.1} parent=5 // pred_check_branch
        %493 = sbr.rel (%p491) target = $region100
      $region99: #{mlp_predictor_forward.1} parent=5 // pred_region
        %s494 = ssub.s32 %s12, 2
        // Predicated region
        $region101: #{mlp_predictor_forward.1} parent=99 // pred_check
          %p495 = pneg %p151
        $region102: #{mlp_predictor_forward.1} parent=99 // pred_check_branch
          %497 = sbr.rel (%p495) target = $region104
        $region103: #{mlp_predictor_forward.1} parent=99 // pred_region
          %s498 = sand.u32 %s136, 1
          %s499 = sand.u32 %s136, 1
          %s500 = smul.addr %s499, 16
          %s501 = scalar_lea.vmem [#allocation4], %s500
        $region104: #{mlp_predictor_forward.1} parent=99 // pred_fallthru
          _
      $region100: #{mlp_predictor_forward.1} parent=5 // pred_fallthru
        _
    $region6: #{mlp_predictor_forward.1} parent=1 // loop_footer
      %s16 = sadd.s32 1, %s12
    $region7: #{mlp_predictor_forward.1} parent=1 // loop_footer_branch
      %11 = sbr.rel target = $region3
    $region8: #{mlp_predictor_forward.1} parent=1 // loop_exit
      _
    %502 = vsyncpa [#allocation3], 1
    %s503 = scalar_lea.sflag [#allocation3], 1
    %504 = vsyncpa %s503, 1

</llo_original>
